<compile_context>
chip_gen: v5e
topology: v5e:2x2
jax: 0.10.0
libtpu: 0.0.40
codegen_flags: <defaults>
</compile_context>

<pallas_src>
import functools

import jax
import jax.numpy as jnp
from jax.experimental import pallas as pl
from jax.experimental.pallas import tpu as pltpu


def _round_up(x, m):
    return (x + m - 1) // m * m


def _sublane_multiple(dtype):
    # f32 -> 8, bf16 -> 16, int8/fp8 -> 32 (second-minor packing).
    return max(8, 32 // jnp.dtype(dtype).itemsize)


def _vmem_capacity_bytes():
    try:
        cap = int(pltpu.get_tpu_info().vmem_capacity_bytes)
        if cap > 0:
            return cap
    except Exception:
        pass
    return 64 << 20  # conservative default (v7x per-core VMEM)


def _default_ti():
    try:
        kind = jax.devices()[0].device_kind.lower()
    except Exception:
        kind = ""
    # v5e has a single vector-store slot: a longer K per reduction step halves
    # the (tm, Cp) f32 accumulator read-modify-write traffic.
    return 512 if "v5" in kind else 256


def _vmem_working_set(tm, Cp, Ip, ti, itemsize, *, resident):
    """Per-step VMEM bytes: double-buffered tiles + f32 scratch + intermediates."""
    wi = Ip if resident else ti  # weight extent held in VMEM along I
    return (
        2 * tm * Cp * itemsize          # x tile (double-buffered)
        + 2 * tm * Cp * itemsize        # output tile
        + 2 * Cp * 2 * wi * itemsize    # fused W1||W2
        + 2 * wi * Cp * itemsize        # Wp
        + 2 * 8 * 2 * wi * itemsize     # b1||b2 (sublane-padded)
        + 2 * 8 * Cp * itemsize         # bp
        + tm * Cp * 4                   # f32 accumulator scratch
        + tm * Cp * 4                   # partial c_proj product (f32)
        + tm * 2 * ti * 4               # h12 in f32
        + tm * ti * 4                   # gated activation in f32
        + tm * ti * itemsize            # gated activation cast to MXU dtype
    )


def prepare_ffn_params(w1, b1, w2, b2, wp, bp, *, ti=None):
    """One-time parameter prep (hoisted out of the per-call path).

    Weights are [in_features, out_features] (transposed from nn.Linear's
    [out, in]); biases are [1, out_features].

    Pads C -> mult of 128 and I -> mult of ti with zeros (exact for SwiGLU and
    the c_proj reduction), fuses W1||W2 and b1||b2 per I-tile, and reshapes
    every weight into per-I-tile 3-D slabs so the kernel can either stream one
    tile per grid step or keep everything VMEM-resident and index the leading
    tile axis dynamically.
    """
    C, I = w1.shape
    if ti is None:
        ti = _default_ti()
    Cp = _round_up(C, 128)
    ti = min(_round_up(ti, 128), _round_up(I, 128))
    Ip = _round_up(I, ti)
    nI = Ip // ti

    def pad2(a, rows, cols):
        pr, pc = rows - a.shape[0], cols - a.shape[1]
        return a if (pr == 0 and pc == 0) else jnp.pad(a, ((0, pr), (0, pc)))

    w1p = pad2(w1, Cp, Ip)
    w2p = pad2(w2, Cp, Ip)
    b1p = pad2(b1, 1, Ip)
    b2p = pad2(b2, 1, Ip)
    wpp = pad2(wp, Ip, Cp)
    bpp = pad2(bp, 1, Cp)

    # Per-I-tile fusion: tile k of w12 is [W1_tile_k || W2_tile_k] -> one MXU pass.
    w1t = w1p.reshape(Cp, nI, ti).transpose(1, 0, 2)   # (nI, Cp, ti)
    w2t = w2p.reshape(Cp, nI, ti).transpose(1, 0, 2)
    w12 = jnp.concatenate([w1t, w2t], axis=2)          # (nI, Cp, 2*ti)
    b1t = b1p.reshape(1, nI, ti).transpose(1, 0, 2)    # (nI, 1, ti)
    b2t = b2p.reshape(1, nI, ti).transpose(1, 0, 2)
    b12 = jnp.concatenate([b1t, b2t], axis=2)          # (nI, 1, 2*ti)
    wpt = wpp.reshape(nI, ti, Cp)                      # (nI, ti, Cp)

    return dict(w12=w12, b12=b12, wp=wpt, bp=bpp,
                C=C, I=I, Cp=Cp, Ip=Ip, ti=ti)


def _ffn_kernel(x_ref, w12_ref, b12_ref, wp_ref, bp_ref, o_ref, acc_ref,
                *, ti, resident):
    k = pl.program_id(1)  # reduction step over the intermediate dim I

    @pl.when(k == 0)
    def _init():
        acc_ref[...] = jnp.zeros_like(acc_ref)

    x = x_ref[...]                 # native dtype (bf16 inputs -> bf16 MXU feeds)
    j = k if resident else 0       # resident: full weights in VMEM, index tile k
    w12 = w12_ref[j]               # (Cp, 2*ti)
    b12 = b12_ref[j]               # (1, 2*ti)
    wpk = wp_ref[j]                # (ti, Cp)

    # Fused c_fc1 || c_fc2: one MXU pass over 2*ti output columns, f32 accumulate.
    h12 = jnp.dot(x, w12, preferred_element_type=jnp.float32)
    h12 = h12 + b12.astype(jnp.float32)
    h1 = h12[:, :ti]
    h2 = h12[:, ti:]

    # SwiGLU gate in f32 (sigmoid goes to the EUP).
    h = (h1 * jax.nn.sigmoid(h1)) * h2

    # Partial c_proj for this I-slice, accumulated in f32 VMEM scratch.
    acc_ref[...] += jnp.dot(h.astype(x.dtype), wpk,
                            preferred_element_type=jnp.float32)

    @pl.when(k == pl.num_programs(1) - 1)
    def _finalize():
        # bp is added exactly once, at the final reduction step.
        y = acc_ref[...] + bp_ref[...].astype(jnp.float32)
        # TODO(synk): dropout is identity (eval mode / p=0); stochastic dropout
        # would use pltpu.prng_seed + pltpu.prng_random_bits here.
        o_ref[...] = y.astype(o_ref.dtype)


def feed_forward(x, params, *, tm=None, resident=None):
    """x: [B, T, C] -> [B, T, C]. `params` from prepare_ffn_params()."""
    w12, b12, wpt, bpp = params["w12"], params["b12"], params["wp"], params["bp"]
    C, I, Cp, Ip, ti = params["C"], params["I"], params["Cp"], params["Ip"], params["ti"]
    B, T, Cx = x.shape
    if Cx != C:
        raise ValueError(f"x last dim {Cx} != prepared C {C}")

    # Keep MXU operands in the activation dtype (prefer preparing params in the
    # compute dtype so this cast never runs in the hot path).
    if w12.dtype != x.dtype:
        w12, b12, wpt, bpp = (a.astype(x.dtype) for a in (w12, b12, wpt, bpp))

    M = B * T
    nI = Ip // ti
    itemsize = jnp.dtype(x.dtype).itemsize
    sub = _sublane_multiple(x.dtype)

    # Row-tile cap: dtype sublane multiple, and keep >= 2 M tiles when M allows
    # so the "parallel" axis feeds both v7x TensorCores.
    m_aligned = _round_up(M, sub)
    cap = m_aligned
    if m_aligned >= 2 * sub:
        cap = min(cap, _round_up((m_aligned + 1) // 2, sub))

    capacity = _vmem_capacity_bytes()            # 128 MiB v5e/v6e, 64 MiB v7x
    budget = max(capacity - (8 << 20), capacity // 2)

    if resident is None:
        probe_tm = min(max(sub, 128), cap)
        resident = _vmem_working_set(probe_tm, Cp, Ip, ti, itemsize,
                                     resident=True) <= budget
    resident = bool(resident)

    if tm is None:
        cands = sorted({min(_round_up(c, sub), cap) for c in
                        (1024, 768, 512, 384, 256, 192, 128, 96, 64, 48, 32, 24, 16, 8)}
                       | {cap}, reverse=True)
        tm = cands[-1]
        for c in cands:
            if c >= sub and _vmem_working_set(c, Cp, Ip, ti, itemsize,
                                              resident=resident) <= budget:
                tm = c
                break
    else:
        tm = max(sub, min(_round_up(tm, sub), cap))

    Mp = _round_up(M, tm)
    n_mtiles = Mp // tm

    x2d = x.reshape(M, C)
    if Mp != M or Cp != C:
        x2d = jnp.pad(x2d, ((0, Mp - M), (0, Cp - C)))

    working = _vmem_working_set(tm, Cp, Ip, ti, itemsize, resident=resident)
    vmem_limit = int(min(capacity,
                         max(working + max(working // 4, 8 << 20), 32 << 20)))

    weight_bytes = (3 * Cp * Ip + 2 * Ip + Cp) * itemsize
    streams = 1 if resident else n_mtiles        # weights re-streamed per M tile
    cost = pl.CostEstimate(
        flops=6 * M * C * I,                     # fc1 + fc2 + proj
        transcendentals=M * I,                   # sigmoid
        bytes_accessed=int(2 * M * Cp * itemsize + streams * weight_bytes),
    )

    if resident:
        # Constant block index => fetched once, never re-streamed across M tiles.
        w12_spec = pl.BlockSpec((nI, Cp, 2 * ti), lambda i, k: (0, 0, 0))
        b12_spec = pl.BlockSpec((nI, 1, 2 * ti), lambda i, k: (0, 0, 0))
        wp_spec = pl.BlockSpec((nI, ti, Cp), lambda i, k: (0, 0, 0))
    else:
        w12_spec = pl.BlockSpec((1, Cp, 2 * ti), lambda i, k: (k, 0, 0))
        b12_spec = pl.BlockSpec((1, 1, 2 * ti), lambda i, k: (k, 0, 0))
        wp_spec = pl.BlockSpec((1, ti, Cp), lambda i, k: (k, 0, 0))

    kernel = functools.partial(_ffn_kernel, ti=ti, resident=resident)

    out = pl.pallas_call(
        kernel,
        out_shape=jax.ShapeDtypeStruct((Mp, Cp), x.dtype),
        grid_spec=pltpu.PrefetchScalarGridSpec(
            num_scalar_prefetch=0,
            grid=(n_mtiles, nI),
            in_specs=[
                pl.BlockSpec((tm, Cp), lambda i, k: (i, 0)),  # x: reused over I
                w12_spec,                                      # fused W1||W2
                b12_spec,                                      # fused b1||b2
                wp_spec,                                       # Wp
                pl.BlockSpec((1, Cp), lambda i, k: (0, 0)),    # bp (finalize only)
            ],
            out_specs=pl.BlockSpec((tm, Cp), lambda i, k: (i, 0)),
            scratch_shapes=[pltpu.VMEM((tm, Cp), jnp.float32)],
        ),
        compiler_params=pltpu.CompilerParams(
            dimension_semantics=("parallel", "arbitrary"),
            vmem_limit_bytes=vmem_limit,
        ),
        cost_estimate=cost,
    )(x2d, w12, b12, wpt, bpp)

    y = out
    if Mp != M or Cp != C:
        y = y[:M, :C]
    return y.reshape(B, T, C)


def feed_forward_ref(x2d, w1, b1, w2, b2, wp, bp):
    """Pure-JAX reference (weights [in, out], biases [1, out])."""
    h1 = x2d @ w1 + b1[0]
    h2 = x2d @ w2 + b2[0]
    h = jax.nn.silu(h1) * h2
    return h @ wp + bp[0]


if __name__ == "__main__":
    def make_raw_params(key, n_embd):
        intermediate = int(4 * n_embd * 2 / 3)
        k1, k2, k3, k4, k5, k6 = jax.random.split(key, 6)

        def init_linear(kw, kb, fan_in, fan_out):
            bound = 1.0 / (fan_in ** 0.5)
            w = jax.random.uniform(kw, (fan_in, fan_out), jnp.float32, -bound, bound)
            b = jax.random.uniform(kb, (1, fan_out), jnp.float32, -bound, bound)
            return w, b

        w1, b1 = init_linear(k1, k2, n_embd, intermediate)
        w2, b2 = init_linear(k3, k4, n_embd, intermediate)
        wp, bp = init_linear(k5, k6, intermediate, n_embd)
        return (w1, b1, w2, b2, wp, bp)

    key = jax.random.PRNGKey(0)
    ka, kb_, kx1, kx2 = jax.random.split(key, 4)

    # --- Config A: n_embd=32 (intermediate = 85), B=2, T=8 ---
    n_embd = 32
    raw = make_raw_params(ka, n_embd)
    x = jax.random.normal(kx1, (2, 8, n_embd), jnp.float32)
    y_ref = feed_forward_ref(x.reshape(-1, n_embd), *raw).reshape(x.shape)

    params_f32 = prepare_ffn_params(*raw)                # prepared once, reused
    y = feed_forward(x, params_f32)
    jax.block_until_ready(y)
    assert y.shape == x.shape
    assert jnp.allclose(y, y_ref, atol=1e-4, rtol=1e-4), "f32 mismatch vs reference"

    # bf16 path (bf16 MXU operands, f32 gate/accumulate): loose check.
    raw_bf = tuple(a.astype(jnp.bfloat16) for a in raw)
    params_bf = prepare_ffn_params(*raw_bf)
    y_bf = feed_forward(x.astype(jnp.bfloat16), params_bf)
    jax.block_until_ready(y_bf)
    assert y_bf.dtype == jnp.bfloat16
    assert jnp.allclose(y_bf.astype(jnp.float32), y_ref, atol=2.5e-1, rtol=1e-1), \
        "bf16 mismatch vs reference"

    # --- Config B: n_embd=64 (intermediate = 170 -> 2 I-tiles at ti=128), B=2, T=16 ---
    n_embd2 = 64
    raw2 = make_raw_params(kb_, n_embd2)
    x2 = jax.random.normal(kx2, (2, 16, n_embd2), jnp.float32)
    y2_ref = feed_forward_ref(x2.reshape(-1, n_embd2), *raw2).reshape(x2.shape)

    params2 = prepare_ffn_params(*raw2, ti=128)
    y2 = feed_forward(x2, params2)                    # auto (weights VMEM-resident)
    y2s = feed_forward(x2, params2, resident=False)   # forced streaming path
    jax.block_until_ready((y2, y2s))
    assert jnp.allclose(y2, y2_ref, atol=1e-4, rtol=1e-4), "resident path mismatch"
    assert jnp.allclose(y2s, y2_ref, atol=1e-4, rtol=1e-4), "streaming path mismatch"

    print("KERNEL_OK")
</pallas_src>

<mosaic_0001>
module attributes {stable_mosaic.version = 11 : i64} {
  func.func @_ffn_kernel(%arg0: i32, %arg1: i32, %arg2: memref<8x128xf32, #tpu.memory_space<vmem>>, %arg3: memref<1x128x256xf32, #tpu.memory_space<vmem>>, %arg4: memref<1x1x256xf32, #tpu.memory_space<vmem>>, %arg5: memref<1x128x128xf32, #tpu.memory_space<vmem>>, %arg6: memref<1x128xf32, #tpu.memory_space<vmem>>, %arg7: memref<8x128xf32, #tpu.memory_space<vmem>>, %arg8: memref<8x128xf32, #tpu.memory_space<vmem>>) attributes {dimension_semantics = [#tpu.dimension_semantics<parallel>, #tpu.dimension_semantics<arbitrary>], iteration_bounds = array<i64: 2, 1>, scalar_prefetch = 0 : i64, scratch_operands = 1 : i64, tpu.core_type = #tpu.core_type<tc>, window_params = [{transform_indices = @transform_0, window_bounds = array<i64: 8, 128>}, {pipeline_mode = #tpu.pipeline_mode<synchronous>, transform_indices = @transform_1, window_bounds = array<i64: 1, 128, 256>}, {pipeline_mode = #tpu.pipeline_mode<synchronous>, transform_indices = @transform_2, window_bounds = array<i64: 1, 1, 256>}, {pipeline_mode = #tpu.pipeline_mode<synchronous>, transform_indices = @transform_3, window_bounds = array<i64: 1, 128, 128>}, {pipeline_mode = #tpu.pipeline_mode<synchronous>, transform_indices = @transform_4, window_bounds = array<i64: 1, 128>}, {transform_indices = @transform_5, window_bounds = array<i64: 8, 128>}]} {
    %c0_i32 = arith.constant 0 : i32
    %0 = arith.cmpi eq, %arg1, %c0_i32 : i32
    %1 = arith.extui %0 : i1 to i32
    %c0_i32_0 = arith.constant 0 : i32
    %2 = arith.cmpi ne, %1, %c0_i32_0 : i32
    scf.if %2 {
      %cst_16 = arith.constant 0.000000e+00 : f32
      %32 = vector.broadcast %cst_16 : f32 to vector<8x128xf32>
      %c0_17 = arith.constant 0 : index
      %c0_18 = arith.constant 0 : index
      %33 = vector.load %arg8[%c0_17, %c0_18] : memref<8x128xf32, #tpu.memory_space<vmem>>, vector<8x128xf32>
      tpu.vector_store %arg8[%c0_17, %c0_18], %32 {strides = array<i32>} : memref<8x128xf32, #tpu.memory_space<vmem>>, vector<8x128xf32>,
    } else {
    }
    %c0 = arith.constant 0 : index
    %c0_1 = arith.constant 0 : index
    %3 = vector.load %arg2[%c0, %c0_1] : memref<8x128xf32, #tpu.memory_space<vmem>>, vector<8x128xf32>
    %4 = arith.index_cast %arg1 : i32 to index
    %c0_2 = arith.constant 0 : index
    %c0_3 = arith.constant 0 : index
    %5 = vector.load %arg3[%4, %c0_2, %c0_3] : memref<1x128x256xf32, #tpu.memory_space<vmem>>, vector<1x128x256xf32>
    %6 = vector.shape_cast %5 : vector<1x128x256xf32> to vector<128x256xf32>
    %7 = arith.index_cast %arg1 : i32 to index
    %c0_4 = arith.constant 0 : index
    %c0_5 = arith.constant 0 : index
    %8 = vector.load %arg4[%7, %c0_4, %c0_5] : memref<1x1x256xf32, #tpu.memory_space<vmem>>, vector<1x1x256xf32>
    %9 = vector.shape_cast %8 : vector<1x1x256xf32> to vector<1x256xf32>
    %10 = arith.index_cast %arg1 : i32 to index
    %c0_6 = arith.constant 0 : index
    %c0_7 = arith.constant 0 : index
    %11 = vector.load %arg5[%10, %c0_6, %c0_7] : memref<1x128x128xf32, #tpu.memory_space<vmem>>, vector<1x128x128xf32>
    %12 = vector.shape_cast %11 : vector<1x128x128xf32> to vector<128x128xf32>
    %cst = arith.constant dense<0.000000e+00> : vector<8x256xf32>
    %13 = tpu.matmul %3, %6, %cst {dimension_numbers = #tpu.dot_dimension_numbers<[1], [0], [0], [1], [0, 0, 1, 1], [], []>} : vector<8x128xf32>, vector<128x256xf32>, vector<8x256xf32> -> vector<8x256xf32>
    %14 = vector.broadcast %9 : vector<1x256xf32> to vector<8x256xf32>
    %15 = arith.addf %13, %14 : vector<8x256xf32>
    %16 = vector.extract_strided_slice %15 {offsets = [0, 0], sizes = [8, 128], strides = [1, 1]} : vector<8x256xf32> to vector<8x128xf32>
    %17 = vector.extract_strided_slice %15 {offsets = [0, 128], sizes = [8, 128], strides = [1, 1]} : vector<8x256xf32> to vector<8x128xf32>
    %18 = arith.negf %16 : vector<8x128xf32>
    %19 = math.exp %18 : vector<8x128xf32>
    %cst_8 = arith.constant 1.000000e+00 : f32
    %20 = vector.broadcast %cst_8 : f32 to vector<8x128xf32>
    %21 = arith.addf %20, %19 : vector<8x128xf32>
    %22 = arith.divf %20, %21 : vector<8x128xf32>
    %23 = arith.mulf %16, %22 : vector<8x128xf32>
    %24 = arith.mulf %23, %17 : vector<8x128xf32>
    %c0_9 = arith.constant 0 : index
    %c0_10 = arith.constant 0 : index
    %25 = vector.load %arg8[%c0_9, %c0_10] : memref<8x128xf32, #tpu.memory_space<vmem>>, vector<8x128xf32>
    %cst_11 = arith.constant dense<0.000000e+00> : vector<8x128xf32>
    %26 = tpu.matmul %24, %12, %cst_11 {dimension_numbers = #tpu.dot_dimension_numbers<[1], [0], [0], [1], [0, 0, 1, 1], [], []>} : vector<8x128xf32>, vector<128x128xf32>, vector<8x128xf32> -> vector<8x128xf32>
    %27 = arith.addf %25, %26 : vector<8x128xf32>
    %c0_12 = arith.constant 0 : index
    %c0_13 = arith.constant 0 : index
    %28 = vector.load %arg8[%c0_12, %c0_13] : memref<8x128xf32, #tpu.memory_space<vmem>>, vector<8x128xf32>
    tpu.vector_store %arg8[%c0_12, %c0_13], %27 {strides = array<i32>} : memref<8x128xf32, #tpu.memory_space<vmem>>, vector<8x128xf32>,
    %c0_i32_14 = arith.constant 0 : i32
    %29 = arith.cmpi eq, %arg1, %c0_i32_14 : i32
    %30 = arith.extui %29 : i1 to i32
    %c0_i32_15 = arith.constant 0 : i32
    %31 = arith.cmpi ne, %30, %c0_i32_15 : i32
    scf.if %31 {
      %c0_16 = arith.constant 0 : index
      %c0_17 = arith.constant 0 : index
      %32 = vector.load %arg8[%c0_16, %c0_17] : memref<8x128xf32, #tpu.memory_space<vmem>>, vector<8x128xf32>
      %c0_18 = arith.constant 0 : index
      %c0_19 = arith.constant 0 : index
      %33 = vector.load %arg6[%c0_18, %c0_19] : memref<1x128xf32, #tpu.memory_space<vmem>>, vector<1x128xf32>
      %34 = vector.broadcast %33 : vector<1x128xf32> to vector<8x128xf32>
      %35 = arith.addf %32, %34 : vector<8x128xf32>
      %c0_20 = arith.constant 0 : index
      %c0_21 = arith.constant 0 : index
      %36 = vector.load %arg7[%c0_20, %c0_21] : memref<8x128xf32, #tpu.memory_space<vmem>>, vector<8x128xf32>
      tpu.vector_store %arg7[%c0_20, %c0_21], %35 {strides = array<i32>} : memref<8x128xf32, #tpu.memory_space<vmem>>, vector<8x128xf32>,
    } else {
    }
    return
  }
  func.func @transform_0(%arg0: i32, %arg1: i32) -> (i32, i32) {
    %c0_i32 = arith.constant 0 : i32
    %c0_i32_0 = arith.constant 0 : i32
    return %arg0, %c0_i32 : i32, i32
  }
  func.func @transform_1(%arg0: i32, %arg1: i32) -> (i32, i32, i32) {
    %c0_i32 = arith.constant 0 : i32
    %c0_i32_0 = arith.constant 0 : i32
    %c0_i32_1 = arith.constant 0 : i32
    %c0_i32_2 = arith.constant 0 : i32
    return %c0_i32, %c0_i32_0, %c0_i32_1 : i32, i32, i32
  }
  func.func @transform_2(%arg0: i32, %arg1: i32) -> (i32, i32, i32) {
    %c0_i32 = arith.constant 0 : i32
    %c0_i32_0 = arith.constant 0 : i32
    %c0_i32_1 = arith.constant 0 : i32
    %c0_i32_2 = arith.constant 0 : i32
    return %c0_i32, %c0_i32_0, %c0_i32_1 : i32, i32, i32
  }
  func.func @transform_3(%arg0: i32, %arg1: i32) -> (i32, i32, i32) {
    %c0_i32 = arith.constant 0 : i32
    %c0_i32_0 = arith.constant 0 : i32
    %c0_i32_1 = arith.constant 0 : i32
    %c0_i32_2 = arith.constant 0 : i32
    return %c0_i32, %c0_i32_0, %c0_i32_1 : i32, i32, i32
  }
  func.func @transform_4(%arg0: i32, %arg1: i32) -> (i32, i32) {
    %c0_i32 = arith.constant 0 : i32
    %c0_i32_0 = arith.constant 0 : i32
    %c0_i32_1 = arith.constant 0 : i32
    return %c0_i32, %c0_i32_0 : i32, i32
  }
  func.func @transform_5(%arg0: i32, %arg1: i32) -> (i32, i32) {
    %c0_i32 = arith.constant 0 : i32
    %c0_i32_0 = arith.constant 0 : i32
    return %arg0, %c0_i32 : i32, i32
  }
}

</mosaic_0001>

<llo_original>
// kernel: tpu_custom_call.1
$region0: #{tpu_custom_call.1}
  #allocation0 [shape = 'u32[]', space=smem, size = 0x4, offset = 0x4, fixed_abs, tag = 'smem constant byte address 0x4 - core index']
  #allocation1 [shape = 'u32[72,128]{1,0:T(1,128)}', space=vmem, size = 0x9000, scoped, tag = 'internal scratch']
  #allocation2 [shape = 'f32[8,128]{1,0:T(8,128)}', space=vmem, size = 0x1000, scoped, tag = 'scratch operand']
  %s0 = inlined_call_operand.hbm [shape: f32[16,128], index: 0, kind: input, shape index: {}]
  %s1 = inlined_call_operand.hbm [shape: f32[1,128,256], index: 1, kind: input, shape index: {}]
  %s2 = inlined_call_operand.hbm [shape: f32[1,1,256], index: 2, kind: input, shape index: {}]
  %s3 = inlined_call_operand.hbm [shape: f32[1,128,128], index: 3, kind: input, shape index: {}]
  %s4 = inlined_call_operand.vmem [shape: f32[1,128], index: 4, kind: input, shape index: {}]
  %s5 = inlined_call_operand.hbm [shape: f32[16,128], index: 5, kind: output, shape index: {}]
  %s6 = sld [smem:[#allocation0]]
  $region77: #{tpu_custom_call.1} parent=0
    _
  %s8 = ssub.s32 1, %s6
  %s9 = scalar_select 0, %s8, %s6
  $region1: #{tpu_custom_call.1} parent=0
    #allocation3 [shape = 'u8[8192]{0}', space=vmem, size = 0x2000, scoped, tag = 'input window, operand 0']
    #allocation4 [shape = 's32[2]{0}', space=sflag, size = 0x8, scoped, tag = 'scoped memory for tpu_custom_call.1']
    #allocation5 [shape = 's32[2]{0}', space=sflag, size = 0x8, scoped, tag = 'scoped memory for tpu_custom_call.1']
    #allocation6 [shape = 'u8[131072]{0}', space=vmem, size = 0x20000, scoped, tag = 'input window, operand 1, single buffered']
    #allocation7 [shape = 's32[1]{0}', space=sflag, size = 0x4, scoped, tag = 'scoped memory for tpu_custom_call.1']
    #allocation8 [shape = 'u8[1024]{0}', space=vmem, size = 0x400, scoped, tag = 'input window, operand 2, single buffered']
    #allocation9 [shape = 'u8[65536]{0}', space=vmem, size = 0x10000, scoped, tag = 'input window, operand 3, single buffered']
    #allocation10 [shape = 's32[1]{0}', space=sflag, size = 0x4, scoped, tag = 'scoped memory for tpu_custom_call.1']
    #allocation11 [shape = 'u8[8192]{0}', space=vmem, size = 0x2000, scoped, tag = 'output window, operand 0']
    %10 = vsyncpa [#allocation4], 0
    %s11 = scalar_lea.sflag [#allocation4], 1
    %12 = vsyncpa %s11, 0
    %13 = vsyncpa [#allocation7], 0
    %14 = vsyncpa [#allocation10], 0
    %15 = vsyncpa [#allocation5], 0
    %s16 = scalar_lea.sflag [#allocation5], 1
    %17 = vsyncpa %s16, 0
    loop: start=0, step=1, limit=4
    $region2: #{tpu_custom_call.1} parent=1 // loop_pre_header
      _
    $region3: #{tpu_custom_call.1} parent=1 // loop_header
      %s19 = sphi 0, %s23
      %p20 = scmp.ge.s32.totalorder %s19, 4
      %s26 = sphi 0, %s38
      %s27 = sphi 0, %s34
      %s28 = sphi 0, %s26
      %s29 = sphi 0, %s27
      %s30 = sphi 0, %s28
      %s31 = sphi 0, %s29
      %s41 = sphi 0, %s43
      %s44 = sphi 0, %s41
      %s45 = sphi 0, %s44
      %s61 = sphi 0, %s45
      %s65 = sphi 0, %s65
      %s67 = sphi 0, %s65
      %s68 = sphi 0, %s67
      %s82 = sphi 0, %s68
      %s86 = sphi 0, %s86
      %s88 = sphi 0, %s86
      %s89 = sphi 0, %s88
      %s103 = sphi 0, %s89
      %s107 = sphi 0, %s107
      %s109 = sphi 0, %s107
      %s110 = sphi 0, %s109
      %s124 = sphi 0, %s110
      %s128 = sphi 0, %s128
      %s130 = sphi 0, %s128
      %s131 = sphi 0, %s130
      %s145 = sphi 0, %s131
      %s151 = sphi 0, %s153
      %s154 = sphi 0, %s151
      %s155 = sphi 0, %s154
      %s171 = sphi 0, %s155
    $region4: #{tpu_custom_call.1} parent=1 // loop_header_branch
      %22 = sbr.rel (%p20) target = $region8
    $region5: #{tpu_custom_call.1} parent=1 // loop_body
      %s24 = ssub.s32 %s19, 1
      %s25 = ssub.s32 %s19, 2
      %s32 = sadd.s32 1, %s27
      %p33 = scmp.ge.s32.totalorder %s32, 1
      %s34 = scalar_select %p33, 0, %s32
      %s35 = sadd.s32 1, %s26
      %s36 = scalar_select %p33, %s35, %s26
      %p37 = scmp.ge.s32.totalorder %s36, 2
      %s38 = scalar_select %p37, 0, %s36
      %s39 = ssub.s32 %s26, %s38
      %p40 = scmp.eq.s32.totalorder %s39, 0
      %s42 = sadd.s32 %s41, 1
      %s43 = scalar_select %p40, %s41, %s42
      %p46 = pneg %p40
      %p47 = scmp.eq.s32.totalorder %s19, 1
      %p48 = por %p46, %p47
      %p49 = scmp.ne.s32.totalorder %s41, %s44
      %p50 = scmp.eq.s32.totalorder %s19, 0
      %p51 = por %p49, %p50
      %p52 = scmp.ne.s32.totalorder %s41, %s44
      %p53 = scmp.eq.s32.totalorder %s24, 1
      %p54 = por %p52, %p53
      %p55 = scmp.ne.s32.totalorder %s44, %s45
      %p56 = scmp.eq.s32.totalorder %s24, 0
      %p57 = por %p55, %p56
      %p58 = scmp.ne.s32.totalorder %s44, %s45
      %p59 = scmp.eq.s32.totalorder %s25, 1
      %p60 = por %p58, %p59
      %p62 = scmp.ne.s32.totalorder %s45, %s61
      %p63 = scmp.eq.s32.totalorder %s25, 0
      %p64 = por %p62, %p63
      %s66 = sadd.s32 %s65, 1
      %p69 = scmp.eq.s32.totalorder %s19, 1
      %p70 = scmp.ne.s32.totalorder %s65, %s67
      %p71 = scmp.eq.s32.totalorder %s19, 0
      %p72 = por %p70, %p71
      %p73 = scmp.ne.s32.totalorder %s65, %s67
      %p74 = scmp.eq.s32.totalorder %s24, 1
      %p75 = por %p73, %p74
      %p76 = scmp.ne.s32.totalorder %s67, %s68
      %p77 = scmp.eq.s32.totalorder %s24, 0
      %p78 = por %p76, %p77
      %p79 = scmp.ne.s32.totalorder %s67, %s68
      %p80 = scmp.eq.s32.totalorder %s25, 1
      %p81 = por %p79, %p80
      %p83 = scmp.ne.s32.totalorder %s68, %s82
      %p84 = scmp.eq.s32.totalorder %s25, 0
      %p85 = por %p83, %p84
      %s87 = sadd.s32 %s86, 1
      %p90 = scmp.eq.s32.totalorder %s19, 1
      %p91 = scmp.ne.s32.totalorder %s86, %s88
      %p92 = scmp.eq.s32.totalorder %s19, 0
      %p93 = por %p91, %p92
      %p94 = scmp.ne.s32.totalorder %s86, %s88
      %p95 = scmp.eq.s32.totalorder %s24, 1
      %p96 = por %p94, %p95
      %p97 = scmp.ne.s32.totalorder %s88, %s89
      %p98 = scmp.eq.s32.totalorder %s24, 0
      %p99 = por %p97, %p98
      %p100 = scmp.ne.s32.totalorder %s88, %s89
      %p101 = scmp.eq.s32.totalorder %s25, 1
      %p102 = por %p100, %p101
      %p104 = scmp.ne.s32.totalorder %s89, %s103
      %p105 = scmp.eq.s32.totalorder %s25, 0
      %p106 = por %p104, %p105
      %s108 = sadd.s32 %s107, 1
      %p111 = scmp.eq.s32.totalorder %s19, 1
      %p112 = scmp.ne.s32.totalorder %s107, %s109
      %p113 = scmp.eq.s32.totalorder %s19, 0
      %p114 = por %p112, %p113
      %p115 = scmp.ne.s32.totalorder %s107, %s109
      %p116 = scmp.eq.s32.totalorder %s24, 1
      %p117 = por %p115, %p116
      %p118 = scmp.ne.s32.totalorder %s109, %s110
      %p119 = scmp.eq.s32.totalorder %s24, 0
      %p120 = por %p118, %p119
      %p121 = scmp.ne.s32.totalorder %s109, %s110
      %p122 = scmp.eq.s32.totalorder %s25, 1
      %p123 = por %p121, %p122
      %p125 = scmp.ne.s32.totalorder %s110, %s124
      %p126 = scmp.eq.s32.totalorder %s25, 0
      %p127 = por %p125, %p126
      %s129 = sadd.s32 %s128, 1
      %p132 = scmp.eq.s32.totalorder %s19, 1
      %p133 = scmp.ne.s32.totalorder %s128, %s130
      %p134 = scmp.eq.s32.totalorder %s19, 0
      %p135 = por %p133, %p134
      %p136 = scmp.ne.s32.totalorder %s128, %s130
      %p137 = scmp.eq.s32.totalorder %s24, 1
      %p138 = por %p136, %p137
      %p139 = scmp.ne.s32.totalorder %s130, %s131
      %p140 = scmp.eq.s32.totalorder %s24, 0
      %p141 = por %p139, %p140
      %p142 = scmp.ne.s32.totalorder %s130, %s131
      %p143 = scmp.eq.s32.totalorder %s25, 1
      %p144 = por %p142, %p143
      %p146 = scmp.ne.s32.totalorder %s131, %s145
      %p147 = scmp.eq.s32.totalorder %s25, 0
      %p148 = por %p146, %p147
      %s149 = ssub.s32 %s26, %s38
      %p150 = scmp.eq.s32.totalorder %s149, 0
      %s152 = sadd.s32 %s151, 1
      %s153 = scalar_select %p150, %s151, %s152
      %p156 = pneg %p150
      %p157 = scmp.eq.s32.totalorder %s19, 1
      %p158 = por %p156, %p157
      %p159 = scmp.ne.s32.totalorder %s151, %s154
      %p160 = scmp.eq.s32.totalorder %s19, 0
      %p161 = por %p159, %p160
      %p162 = scmp.ne.s32.totalorder %s151, %s154
      %p163 = scmp.eq.s32.totalorder %s24, 1
      %p164 = por %p162, %p163
      %p165 = scmp.ne.s32.totalorder %s154, %s155
      %p166 = scmp.eq.s32.totalorder %s24, 0
      %p167 = por %p165, %p166
      %p168 = scmp.ne.s32.totalorder %s154, %s155
      %p169 = scmp.eq.s32.totalorder %s25, 1
      %p170 = por %p168, %p169
      %p172 = scmp.ne.s32.totalorder %s155, %s171
      %p173 = scmp.eq.s32.totalorder %s25, 0
      %p174 = por %p172, %p173
      %p175 = scmp.le.s32.totalorder 1, %s19
      %p176 = scmp.lt.s32.totalorder %s19, 3
      %p177 = pnand %p175, %p176
      %p178 = pneg %p177
      // Predicated region
      $region9: #{tpu_custom_call.1} parent=5 // pred_check
        _
      $region10: #{tpu_custom_call.1} parent=5 // pred_check_branch
        %180 = sbr.rel (%p177) target = $region12
      $region11: #{tpu_custom_call.1} parent=5 // pred_region
        %s181 = ssub.s32 %s19, 1
        // Predicated region
        $region13: #{tpu_custom_call.1} parent=11 // pred_check
          %p182 = pneg %p78
        $region14: #{tpu_custom_call.1} parent=11 // pred_check_branch
          %184 = sbr.rel (%p182) target = $region16
        $region15: #{tpu_custom_call.1} parent=11 // pred_region
          %186 = vsyncadd [#allocation7], 0
          %s187 = sshll.u32 %s1, 4
          %s188 = int_to_ptr.hbm [resolvable:$true] %s187
          %s189 = sshll.u32 [#allocation6], 4
          %s190 = int_to_ptr.vmem [resolvable:$true] %s189
          %195 = dma.hbm_to_vmem [thread:$0]  %s188, 4096, %s190, [#allocation7], 256, 256, 16
        $region16: #{tpu_custom_call.1} parent=11 // pred_fallthru
          _
        // Predicated region
        $region17: #{tpu_custom_call.1} parent=11 // pred_check
          %p196 = pneg %p99
        $region18: #{tpu_custom_call.1} parent=11 // pred_check_branch
          %198 = sbr.rel (%p196) target = $region20
        $region19: #{tpu_custom_call.1} parent=11 // pred_region
          %200 = vsyncadd [#allocation7], 0
          %s202 = sshll.u32 %s2, 4
          %s203 = int_to_ptr.hbm [resolvable:$true] %s202
          %s204 = sshll.u32 [#allocation8], 4
          %s205 = int_to_ptr.vmem [resolvable:$true] %s204
          %207 = dma.hbm_to_vmem [thread:$0]  %s203, 32, %s205, [#allocation7]
        $region20: #{tpu_custom_call.1} parent=11 // pred_fallthru
          _
        // Predicated region
        $region21: #{tpu_custom_call.1} parent=11 // pred_check
          %p208 = pneg %p120
        $region22: #{tpu_custom_call.1} parent=11 // pred_check_branch
          %210 = sbr.rel (%p208) target = $region24
        $region23: #{tpu_custom_call.1} parent=11 // pred_region
          %212 = vsyncadd [#allocation10], 0
          %s213 = sshll.u32 %s3, 4
          %s214 = int_to_ptr.hbm [resolvable:$true] %s213
          %s215 = sshll.u32 [#allocation9], 4
          %s216 = int_to_ptr.vmem [resolvable:$true] %s215
          %221 = dma.hbm_to_vmem [thread:$0]  %s214, 2048, %s216, [#allocation10], 128, 128, 8
        $region24: #{tpu_custom_call.1} parent=11 // pred_fallthru
          _
        // Predicated region
        $region25: #{tpu_custom_call.1} parent=11 // pred_check
          %p222 = pneg %p141
        $region26: #{tpu_custom_call.1} parent=11 // pred_check_branch
          %224 = sbr.rel (%p222) target = $region28
        $region27: #{tpu_custom_call.1} parent=11 // pred_region
          _
        $region28: #{tpu_custom_call.1} parent=11 // pred_fallthru
          _
      $region12: #{tpu_custom_call.1} parent=5 // pred_fallthru
        _
      %p225 = scmp.lt.s32.totalorder %s19, 2
      // Predicated region
      $region29: #{tpu_custom_call.1} parent=5 // pred_check
        %p226 = pneg %p225
      $region30: #{tpu_custom_call.1} parent=5 // pred_check_branch
        %228 = sbr.rel (%p226) target = $region32
      $region31: #{tpu_custom_call.1} parent=5 // pred_region
        // Predicated region
        $region33: #{tpu_custom_call.1} parent=31 // pred_check
          %p229 = pneg %p51
        $region34: #{tpu_custom_call.1} parent=31 // pred_check_branch
          %231 = sbr.rel (%p229) target = $region36
        $region35: #{tpu_custom_call.1} parent=31 // pred_region
          %s232 = sand.u32 %s41, 1
          %s233 = scalar_lea.sflag [#allocation4], %s232
          %s234 = sand.u32 %s41, 1
          %s235 = smul.addr %s234, 8
          %s236 = scalar_lea.vmem [#allocation3], %s235
          %238 = vsyncadd %s233, 0
          %s239 = smul.addr %s26, 8
          %s240 = scalar_lea.hbm %s0, %s239
          %s242 = sshll.u32 %s240, 4
          %s243 = int_to_ptr.hbm [resolvable:$true] %s242
          %s244 = sshll.u32 %s236, 4
          %s245 = int_to_ptr.vmem [resolvable:$true] %s244
          %247 = dma.hbm_to_vmem [thread:$0]  %s243, 128, %s245, %s233
        $region36: #{tpu_custom_call.1} parent=31 // pred_fallthru
          _
      $region32: #{tpu_custom_call.1} parent=5 // pred_fallthru
        _
      %p248 = scmp.le.s32.totalorder 1, %s19
      %p249 = scmp.lt.s32.totalorder %s19, 3
      %p250 = pnand %p248, %p249
      %p251 = pneg %p250
      // Predicated region
      $region37: #{tpu_custom_call.1} parent=5 // pred_check
        _
      $region38: #{tpu_custom_call.1} parent=5 // pred_check_branch
        %253 = sbr.rel (%p250) target = $region40
      $region39: #{tpu_custom_call.1} parent=5 // pred_region
        %s254 = ssub.s32 %s19, 1
        %s255 = sand.u32 %s44, 1
        %s256 = scalar_lea.sflag [#allocation4], %s255
        %s257 = sand.u32 %s44, 1
        %s258 = smul.addr %s257, 8
        %s259 = scalar_lea.vmem [#allocation3], %s258
        // Predicated region
        $region41: #{tpu_custom_call.1} parent=39 // pred_check
          %p260 = pneg %p57
        $region42: #{tpu_custom_call.1} parent=39 // pred_check_branch
          %262 = sbr.rel (%p260) target = $region44
        $region43: #{tpu_custom_call.1} parent=39 // pred_region
          %264 = dma.done %s256, 128
        $region44: #{tpu_custom_call.1} parent=39 // pred_fallthru
          _
        // Predicated region
        $region45: #{tpu_custom_call.1} parent=39 // pred_check
          %p265 = pneg %p78
        $region46: #{tpu_custom_call.1} parent=39 // pred_check_branch
          %267 = sbr.rel (%p265) target = $region48
        $region47: #{tpu_custom_call.1} parent=39 // pred_region
          %269 = dma.done [#allocation7], 4096
        $region48: #{tpu_custom_call.1} parent=39 // pred_fallthru
          _
        // Predicated region
        $region49: #{tpu_custom_call.1} parent=39 // pred_check
          %p270 = pneg %p99
        $region50: #{tpu_custom_call.1} parent=39 // pred_check_branch
          %272 = sbr.rel (%p270) target = $region52
        $region51: #{tpu_custom_call.1} parent=39 // pred_region
          %274 = dma.done [#allocation7], 32
        $region52: #{tpu_custom_call.1} parent=39 // pred_fallthru
          _
        // Predicated region
        $region53: #{tpu_custom_call.1} parent=39 // pred_check
          %p275 = pneg %p120
        $region54: #{tpu_custom_call.1} parent=39 // pred_check_branch
          %277 = sbr.rel (%p275) target = $region56
        $region55: #{tpu_custom_call.1} parent=39 // pred_region
          %279 = dma.done [#allocation10], 2048
        $region56: #{tpu_custom_call.1} parent=39 // pred_fallthru
          _
        %s280 = sand.u32 %s44, 1
        %s281 = scalar_lea.sflag [#allocation4], %s280
        %s282 = sand.u32 %s44, 1
        %s283 = smul.addr %s282, 8
        %s284 = scalar_lea.vmem [#allocation3], %s283
        %p285 = pneg %p57
        %p286 = pneg %p54
        %p287 = pneg %p78
        %p288 = pneg %p75
        %p289 = pneg %p99
        %p290 = pneg %p96
        %p291 = pneg %p120
        %p292 = pneg %p117
        %p293 = pneg %p141
        %p294 = pneg %p138
        %p295 = pneg %p167
        %p296 = pneg %p164
        %s297 = sand.u32 %s154, 1
        %s298 = scalar_lea.sflag [#allocation5], %s297
        %s299 = sand.u32 %s154, 1
        %s300 = smul.addr %s299, 8
        %s301 = scalar_lea.vmem [#allocation11], %s300
        %p302 = scmp.eq.s32.totalorder %s29, 0
        // Predicated region
        $region57: #{tpu_custom_call.1} parent=39 // pred_check
          %p303 = pneg %p302
        $region58: #{tpu_custom_call.1} parent=39 // pred_check_branch
          %305 = sbr.rel (%p303) target = $region60
        $region59: #{tpu_custom_call.1} parent=39 // pred_region
          %306 = vst [vmem:[#allocation2] sm:$0xff] 0.0
        $region60: #{tpu_custom_call.1} parent=39 // pred_fallthru
          _
        %v307 = vld [vmem:[%s259] sm:$0xff]
        %s308 = smul.u32 %s29, 32
        %s309 = smul.addr %s308, 8
        %s310 = scalar_lea.vmem [#allocation6], %s309
        %v311 = vld [vmem:[%s310] sm:$0xff]
        %v312 = vld [vmem:[%s310 + $0x8] sm:$0xff]
        %v313 = vld [vmem:[%s310 + $0x10] sm:$0xff]
        %v314 = vld [vmem:[%s310 + $0x18] sm:$0xff]
        %v315 = vld [vmem:[%s310 + $0x20] sm:$0xff]
        %v316 = vld [vmem:[%s310 + $0x28] sm:$0xff]
        %v317 = vld [vmem:[%s310 + $0x30] sm:$0xff]
        %v318 = vld [vmem:[%s310 + $0x38] sm:$0xff]
        %v319 = vld [vmem:[%s310 + $0x40] sm:$0xff]
        %v320 = vld [vmem:[%s310 + $0x48] sm:$0xff]
        %v321 = vld [vmem:[%s310 + $0x50] sm:$0xff]
        %v322 = vld [vmem:[%s310 + $0x58] sm:$0xff]
        %v323 = vld [vmem:[%s310 + $0x60] sm:$0xff]
        %v324 = vld [vmem:[%s310 + $0x68] sm:$0xff]
        %v325 = vld [vmem:[%s310 + $0x70] sm:$0xff]
        %v326 = vld [vmem:[%s310 + $0x78] sm:$0xff]
        %v327 = vld [vmem:[%s310 + $0x80] sm:$0xff]
        %v328 = vld [vmem:[%s310 + $0x88] sm:$0xff]
        %v329 = vld [vmem:[%s310 + $0x90] sm:$0xff]
        %v330 = vld [vmem:[%s310 + $0x98] sm:$0xff]
        %v331 = vld [vmem:[%s310 + $0xa0] sm:$0xff]
        %v332 = vld [vmem:[%s310 + $0xa8] sm:$0xff]
        %v333 = vld [vmem:[%s310 + $0xb0] sm:$0xff]
        %v334 = vld [vmem:[%s310 + $0xb8] sm:$0xff]
        %v335 = vld [vmem:[%s310 + $0xc0] sm:$0xff]
        %v336 = vld [vmem:[%s310 + $0xc8] sm:$0xff]
        %v337 = vld [vmem:[%s310 + $0xd0] sm:$0xff]
        %v338 = vld [vmem:[%s310 + $0xd8] sm:$0xff]
        %v339 = vld [vmem:[%s310 + $0xe0] sm:$0xff]
        %v340 = vld [vmem:[%s310 + $0xe8] sm:$0xff]
        %v341 = vld [vmem:[%s310 + $0xf0] sm:$0xff]
        %v342 = vld [vmem:[%s310 + $0xf8] sm:$0xff]
        %s343 = smul.u32 %s29, 2
        %s344 = scalar_lea.vmem [#allocation8], %s343
        %v345 = vld [vmem:[%s344] sm:$0x3]
        %s346 = smul.u32 %s29, 128
        %s347 = scalar_lea.vmem [#allocation9], %s346
        %v348 = vld [vmem:[%s347] sm:$0xff]
        %v349 = vld [vmem:[%s347 + $0x8] sm:$0xff]
        %v350 = vld [vmem:[%s347 + $0x10] sm:$0xff]
        %v351 = vld [vmem:[%s347 + $0x18] sm:$0xff]
        %v352 = vld [vmem:[%s347 + $0x20] sm:$0xff]
        %v353 = vld [vmem:[%s347 + $0x28] sm:$0xff]
        %v354 = vld [vmem:[%s347 + $0x30] sm:$0xff]
        %v355 = vld [vmem:[%s347 + $0x38] sm:$0xff]
        %v356 = vld [vmem:[%s347 + $0x40] sm:$0xff]
        %v357 = vld [vmem:[%s347 + $0x48] sm:$0xff]
        %v358 = vld [vmem:[%s347 + $0x50] sm:$0xff]
        %v359 = vld [vmem:[%s347 + $0x58] sm:$0xff]
        %v360 = vld [vmem:[%s347 + $0x60] sm:$0xff]
        %v361 = vld [vmem:[%s347 + $0x68] sm:$0xff]
        %v362 = vld [vmem:[%s347 + $0x70] sm:$0xff]
        %v363 = vld [vmem:[%s347 + $0x78] sm:$0xff]
        %v365 = vperm.slane %v345, 0
        %v366 = vperm.slane %v345, 1
        %369 = vmatpush.msra.mxu0 %v341
        %370 = vmatpush.msra.mxu0 %v339
        %371 = vmatpush.msra.mxu0 %v337
        %372 = vmatpush.msra.mxu0 %v335
        %373 = vmatpush.msra.mxu0 %v333
        %374 = vmatpush.msra.mxu0 %v331
        %375 = vmatpush.msra.mxu0 %v329
        %376 = vmatpush.msra.mxu0 %v327
        %377 = vmatpush.msra.mxu0 %v325
        %378 = vmatpush.msra.mxu0 %v323
        %379 = vmatpush.msra.mxu0 %v321
        %380 = vmatpush.msra.mxu0 %v319
        %381 = vmatpush.msra.mxu0 %v317
        %382 = vmatpush.msra.mxu0 %v315
        %383 = vmatpush.msra.mxu0 %v313
        %384 = vmatpush.msra.mxu0 %v311
        %385 = vmatmul.f32.gmra.mxu0 %v307
        %v386 = vpop.f32.mrf.mxu0
        %v387 = vadd.f32 %v365, %v386
        %388 = vdwg.mxu0
        %389 = vmatpush.msra.mxu0 %v342
        %390 = vmatpush.msra.mxu0 %v340
        %391 = vmatpush.msra.mxu0 %v338
        %392 = vmatpush.msra.mxu0 %v336
        %393 = vmatpush.msra.mxu0 %v334
        %394 = vmatpush.msra.mxu0 %v332
        %395 = vmatpush.msra.mxu0 %v330
        %396 = vmatpush.msra.mxu0 %v328
        %397 = vmatpush.msra.mxu0 %v326
        %398 = vmatpush.msra.mxu0 %v324
        %399 = vmatpush.msra.mxu0 %v322
        %400 = vmatpush.msra.mxu0 %v320
        %401 = vmatpush.msra.mxu0 %v318
        %402 = vmatpush.msra.mxu0 %v316
        %403 = vmatpush.msra.mxu0 %v314
        %404 = vmatpush.msra.mxu0 %v312
        %405 = vmatmul.f32.gmra.mxu0 %v307
        %v406 = vpop.f32.mrf.mxu0
        %v407 = vadd.f32 %v366, %v406
        %408 = vdwg.mxu0
        %v409 = vxor.u32 %v387, 2147483648
        %v410 = vmul.f32 %v409, 1.442695
        %v411 = vpow.pop %v410
        %v412 = vadd.f32 %v411, 1.0
        %v413 = vrcp.pop %v412
        %v414 = vmul.f32 %v412, %v413
        %v415 = vsub.f32 1.0, %v414
        %v416 = vmul.f32 %v413, %v415
        %v417 = vadd.f32 %v413, %v416
        %vm418 = vweird.f32 %v412
        %vm419 = vweird.f32 %v413
        %vm420 = vmor %vm418, %vm419
        %v421 = vsel %vm420, %v413, %v417
        %v422 = vand.u32 2147483647, %v412
        %vm423 = vcmp.eq.f32.partialorder %v422, 8.507059e+37
        %v424 = vand.u32 %v412, 2147483648
        %v425 = vor.u32 1.1754944e-38, %v424
        %v426 = vsel %vm423, %v425, %v421
        %v427 = vmul.f32 1.0, %v426
        %v428 = vmul.f32 %v387, %v427
        %v429 = vmul.f32 %v428, %v407
        %v430 = vld [vmem:[#allocation2] sm:$0xff]
        %431 = vmatpush.msra.mxu0 %v363
        %432 = vmatpush.msra.mxu0 %v362
        %433 = vmatpush.msra.mxu0 %v361
        %434 = vmatpush.msra.mxu0 %v360
        %435 = vmatpush.msra.mxu0 %v359
        %436 = vmatpush.msra.mxu0 %v358
        %437 = vmatpush.msra.mxu0 %v357
        %438 = vmatpush.msra.mxu0 %v356
        %439 = vmatpush.msra.mxu0 %v355
        %440 = vmatpush.msra.mxu0 %v354
        %441 = vmatpush.msra.mxu0 %v353
        %442 = vmatpush.msra.mxu0 %v352
        %443 = vmatpush.msra.mxu0 %v351
        %444 = vmatpush.msra.mxu0 %v350
        %445 = vmatpush.msra.mxu0 %v349
        %446 = vmatpush.msra.mxu0 %v348
        %447 = vmatmul.f32.gmra.mxu0 %v429
        %v448 = vpop.f32.mrf.mxu0
        %v449 = vadd.f32 0.0, %v448
        %450 = vdwg.mxu0
        %v451 = vadd.f32 %v430, %v449
        %452 = vst [vmem:[#allocation2] sm:$0xff] %v451
        // Predicated region
        $region61: #{tpu_custom_call.1} parent=39 // pred_check
          %p453 = pneg %p302
        $region62: #{tpu_custom_call.1} parent=39 // pred_check_branch
          %455 = sbr.rel (%p453) target = $region64
        $region63: #{tpu_custom_call.1} parent=39 // pred_region
          %v456 = vld [vmem:[#allocation2] sm:$0xff]
          %v457 = vld [vmem:[%s4] sm:$0x1]
          %v459 = vperm.slane %v457, 0
          %v461 = vadd.f32 %v456, %v459
          %462 = vst [vmem:[%s301] sm:$0xff] %v461
        $region64: #{tpu_custom_call.1} parent=39 // pred_fallthru
          _
        %s463 = sand.u32 %s154, 1
        %s464 = scalar_lea.sflag [#allocation5], %s463
        %s465 = sand.u32 %s154, 1
        %s466 = smul.addr %s465, 8
        %s467 = scalar_lea.vmem [#allocation11], %s466
        // Predicated region
        $region65: #{tpu_custom_call.1} parent=39 // pred_check
          %p468 = pneg %p164
        $region66: #{tpu_custom_call.1} parent=39 // pred_check_branch
          %470 = sbr.rel (%p468) target = $region68
        $region67: #{tpu_custom_call.1} parent=39 // pred_region
          %472 = vsyncadd %s464, 0
          %s473 = smul.addr %s28, 8
          %s474 = scalar_lea.hbm %s5, %s473
          %s476 = sshll.u32 %s467, 4
          %s477 = int_to_ptr.vmem [resolvable:$true] %s476
          %s478 = sshll.u32 %s474, 4
          %s479 = int_to_ptr.hbm [resolvable:$true] %s478
          %481 = dma.vmem_to_hbm [thread:$0]  %s477, 128, %s479, %s464
        $region68: #{tpu_custom_call.1} parent=39 // pred_fallthru
          _
      $region40: #{tpu_custom_call.1} parent=5 // pred_fallthru
        _
      %p482 = scmp.le.s32.totalorder 2, %s19
      // Predicated region
      $region69: #{tpu_custom_call.1} parent=5 // pred_check
        %p483 = pneg %p482
      $region70: #{tpu_custom_call.1} parent=5 // pred_check_branch
        %485 = sbr.rel (%p483) target = $region72
      $region71: #{tpu_custom_call.1} parent=5 // pred_region
        %s486 = ssub.s32 %s19, 2
        // Predicated region
        $region73: #{tpu_custom_call.1} parent=71 // pred_check
          %p487 = pneg %p170
        $region74: #{tpu_custom_call.1} parent=71 // pred_check_branch
          %489 = sbr.rel (%p487) target = $region76
        $region75: #{tpu_custom_call.1} parent=71 // pred_region
          %s490 = sand.u32 %s155, 1
          %s491 = scalar_lea.sflag [#allocation5], %s490
          %s492 = sand.u32 %s155, 1
          %s493 = smul.addr %s492, 8
          %s494 = scalar_lea.vmem [#allocation11], %s493
          %496 = dma.done %s491, 128
        $region76: #{tpu_custom_call.1} parent=71 // pred_fallthru
          _
      $region72: #{tpu_custom_call.1} parent=5 // pred_fallthru
        _
    $region6: #{tpu_custom_call.1} parent=1 // loop_footer
      %s23 = sadd.s32 1, %s19
    $region7: #{tpu_custom_call.1} parent=1 // loop_footer_branch
      %18 = sbr.rel target = $region3
    $region8: #{tpu_custom_call.1} parent=1 // loop_exit
      _
    %497 = vsyncpa [#allocation4], 1
    %s498 = scalar_lea.sflag [#allocation4], 1
    %499 = vsyncpa %s498, 1
    %500 = vsyncpa [#allocation7], 1
    %501 = vsyncpa [#allocation10], 1
    %502 = vsyncpa [#allocation5], 1
    %s503 = scalar_lea.sflag [#allocation5], 1
    %504 = vsyncpa %s503, 1

</llo_original>
